<compile_context>
chip_gen: v7x
topology: tpu7x:2x2x1
jax: 0.10.0
libtpu: 0.0.40
codegen_flags: <defaults>
</compile_context>

<pallas_src>
import jax
import jax.numpy as jnp
from jax.experimental import pallas as pl
from jax.experimental.pallas import tpu as pltpu

NEG_SLOPE = 0.01  # torch.nn.LeakyReLU default
LANES = 128


def _pad_lanes(n):
    return max(LANES, ((n + LANES - 1) // LANES) * LANES)


def _pick_tl(L):
    """Largest time tile (multiple of 8, <= 2048) dividing L; else the full L."""
    for cand in (2048, 1024, 512, 256, 128, 64, 32, 16, 8):
        if L >= cand and L % cand == 0:
            return cand
    return L


# ----------------------------------------------------------------------------
# Fused CausalConvolutionBlock kernel
# ----------------------------------------------------------------------------
def _make_block_kernel(k, d, TL, Cin, Cin_p, C_p, merged, final_pool, cdt):
    """conv1 -> LeakyReLU -> conv2 -> LeakyReLU + residual add, fused.

    Grid = (B, nT). Causal history of P=(k-1)*d rows is carried across time
    tiles in VMEM staging buffers; the current tile lives at rows [P, P+TL).
    If `merged`, the 1x1 residual conv rides along conv1's output columns
    [C_p, 2*C_p). If `final_pool`, AdaptiveMaxPool1d(1) + Linear are fused via
    a running-max accumulator.
    """
    P = (k - 1) * d

    def kernel(*refs):
        idx = 0
        h_ref = refs[idx]; idx += 1
        w1_ref = refs[idx]; idx += 1
        b1_ref = refs[idx]; idx += 1
        w2_ref = refs[idx]; idx += 1
        b2_ref = refs[idx]; idx += 1
        if merged:
            bres_ref = refs[idx]; idx += 1
        if final_pool:
            wlin_ref = refs[idx]; idx += 1
            blin_ref = refs[idx]; idx += 1
        out_ref = refs[idx]; idx += 1
        x_stage = refs[idx]; idx += 1
        z_stage = refs[idx]; idx += 1
        mx_ref = refs[idx] if final_pool else None

        t = pl.program_id(1)
        nT = pl.num_programs(1)

        # --- init: zero causal history (and padded lanes) once per batch row
        @pl.when(t == 0)
        def _init():
            x_stage[...] = jnp.zeros_like(x_stage)
            z_stage[...] = jnp.zeros_like(z_stage)
            if final_pool:
                mx_ref[...] = jnp.full_like(mx_ref, -jnp.inf)

        # --- stage the current tile (lane-extend tiny block-0 input in vregs)
        h = h_ref[0].astype(cdt)                              # (TL, Cin)
        if Cin < Cin_p:
            h = jnp.concatenate(
                [h, jnp.zeros((TL, Cin_p - Cin), cdt)], axis=-1)
        x_stage[P:P + TL, :] = h                              # rows [P, P+TL)

        # --- conv1 (+ merged 1x1 residual): K taps as one MXU contraction ----
        taps = [x_stage[j * d: j * d + TL, :] for j in range(k - 1)] + [h]
        xin = taps[0] if k == 1 else jnp.concatenate(taps, axis=-1)
        zfull = jnp.dot(xin, w1_ref[...], preferred_element_type=jnp.float32)
        z = zfull[:, :C_p] + b1_ref[...]
        z = jnp.maximum(z, NEG_SLOPE * z)                     # LeakyReLU
        z_c = z.astype(cdt)
        z_stage[P:P + TL, :] = z_c

        # --- conv2 ------------------------------------------------------------
        ztaps = [z_stage[j * d: j * d + TL, :] for j in range(k - 1)] + [z_c]
        zin = ztaps[0] if k == 1 else jnp.concatenate(ztaps, axis=-1)
        y = jnp.dot(zin, w2_ref[...], preferred_element_type=jnp.float32)
        y = y + b2_ref[...]
        y = jnp.maximum(y, NEG_SLOPE * y)                     # LeakyReLU

        # --- residual path ----------------------------------------------------
        if merged:
            res = zfull[:, C_p:] + bres_ref[...]
        else:
            res = h                                           # identity
        out = y + res                                         # (TL, C_p) fp32

        # --- carry causal history for the next tile (from vregs, no memmove) --
        if P > 0:
            @pl.when(t + 1 < nT)
            def _carry():
                if P <= TL:
                    x_stage[0:P, :] = h[TL - P:TL, :]
                    z_stage[0:P, :] = z_c[TL - P:TL, :]
                else:
                    # History longer than a tile: slide old history down by TL
                    # (load materializes before the store), then append the
                    # fresh tile from vregs.
                    xh = x_stage[TL:P, :]
                    zh = z_stage[TL:P, :]
                    x_stage[0:P - TL, :] = xh
                    z_stage[0:P - TL, :] = zh
                    x_stage[P - TL:P, :] = h
                    z_stage[P - TL:P, :] = z_c

        if final_pool:
            # fused AdaptiveMaxPool1d(1): running max over time tiles
            mx_ref[...] = jnp.maximum(mx_ref[...],
                                      jnp.max(out, axis=0, keepdims=True))

            @pl.when(t == nT - 1)
            def _finish():
                o = jnp.dot(mx_ref[...].astype(cdt), wlin_ref[...],
                            preferred_element_type=jnp.float32)
                o = o + blin_ref[...]
                out_ref[0] = o.astype(out_ref.dtype)
        else:
            out_ref[0] = out.astype(out_ref.dtype)

    return kernel


# ----------------------------------------------------------------------------
# pallas_call plumbing for one block
# ----------------------------------------------------------------------------
def causal_conv_block_call(h, blk, *, k, d, TL, final_pool=False,
                           wlin=None, blin=None,
                           compute_dtype=jnp.bfloat16):
    """h: (B, L, Cin) activations (Cin may be the raw, un-padded channel count
    for block 0; later blocks pass the lane-padded previous output).
    Returns (B, L, C_p) in compute_dtype, or (B, 1, Out_p) fp32 if final_pool.
    """
    B, L, Cin = h.shape
    assert L % TL == 0
    nT = L // TL
    cin_p, c_p, merged = blk["cin_p"], blk["c_p"], blk["merged"]
    assert Cin <= cin_p
    P = (k - 1) * d
    ncols = blk["w1"].shape[1]

    in_specs = [
        pl.BlockSpec((1, TL, Cin), lambda b, t: (b, t, 0)),
        pl.BlockSpec((k * cin_p, ncols), lambda b, t: (0, 0)),
        pl.BlockSpec((1, c_p), lambda b, t: (0, 0)),
        pl.BlockSpec((k * c_p, c_p), lambda b, t: (0, 0)),
        pl.BlockSpec((1, c_p), lambda b, t: (0, 0)),
    ]
    args = [h, blk["w1"], blk["b1"], blk["w2"], blk["b2"]]
    if merged:
        in_specs.append(pl.BlockSpec((1, c_p), lambda b, t: (0, 0)))
        args.append(blk["bres"])
    if final_pool:
        r_p, out_p = wlin.shape
        assert r_p == c_p
        in_specs += [pl.BlockSpec((r_p, out_p), lambda b, t: (0, 0)),
                     pl.BlockSpec((1, out_p), lambda b, t: (0, 0))]
        args += [wlin, blin]
        out_specs = pl.BlockSpec((1, 1, out_p), lambda b, t: (b, 0, 0))
        out_shape = jax.ShapeDtypeStruct((B, 1, out_p), jnp.float32)
    else:
        out_specs = pl.BlockSpec((1, TL, c_p), lambda b, t: (b, t, 0))
        out_shape = jax.ShapeDtypeStruct((B, L, c_p), compute_dtype)

    scratch = [pltpu.VMEM((P + TL, cin_p), compute_dtype),
               pltpu.VMEM((P + TL, c_p), compute_dtype)]
    if final_pool:
        scratch.append(pltpu.VMEM((1, c_p), jnp.float32))

    kern = _make_block_kernel(k, d, TL, Cin, cin_p, c_p, merged, final_pool,
                              compute_dtype)
    return pl.pallas_call(
        kern,
        grid=(B, nT),
        in_specs=in_specs,
        out_specs=out_specs,
        out_shape=out_shape,
        scratch_shapes=scratch,
        compiler_params=pltpu.CompilerParams(
            dimension_semantics=("parallel", "arbitrary"),
            vmem_limit_bytes=32 * 1024 * 1024),
    )(*args)


# ----------------------------------------------------------------------------
# Full encoder
# ----------------------------------------------------------------------------
def causal_cnn_encoder(x, prep, kernel_size, *, compute_dtype=jnp.bfloat16):
    """x: (B, C_in, L) (PyTorch NCL). Returns (B, out_channels) fp32."""
    B, Cin, L = x.shape
    h = jnp.transpose(x, (0, 2, 1)).astype(compute_dtype)   # (B, L, Cin), unpadded
    TL = _pick_tl(L)
    n = len(prep["blocks"])
    out = None
    for i, (blk, dil) in enumerate(zip(prep["blocks"], prep["dilations"])):
        final = (i == n - 1)
        r = causal_conv_block_call(
            h, blk, k=kernel_size, d=dil, TL=TL,
            final_pool=final,
            wlin=prep["wlin"] if final else None,
            blin=prep["blin"] if final else None,
            compute_dtype=compute_dtype)
        if final:
            out = r       # (B, 1, Out_p) fp32; feature map never hits HBM
        else:
            h = r         # (B, L, C_p) in compute_dtype
    return out[:, 0, :prep["out_channels"]]


# ----------------------------------------------------------------------------
# Deterministic parameter init (synthetic; mirrors module __init__ shapes)
# ----------------------------------------------------------------------------
def init_params(key, in_channels, channels, depth, reduced_size, out_channels,
                kernel_size):
    blocks, dilations = [], []
    dil = 1
    for i in range(depth + 1):
        cin = in_channels if i == 0 else channels
        cout = channels if i < depth else reduced_size
        key, k1, k2, k3, k4, k5, k6 = jax.random.split(key, 7)
        blk = {
            "w1": 0.1 * jax.random.normal(k1, (kernel_size, cin, cout), jnp.float32),
            "b1": 0.1 * jax.random.normal(k2, (1, cout), jnp.float32),
            "w2": 0.1 * jax.random.normal(k3, (kernel_size, cout, cout), jnp.float32),
            "b2": 0.1 * jax.random.normal(k4, (1, cout), jnp.float32),
        }
        if cin != cout:
            blk["wres"] = 0.1 * jax.random.normal(k5, (1, cin, cout), jnp.float32)
            blk["bres"] = 0.1 * jax.random.normal(k6, (1, cout), jnp.float32)
        else:
            blk["wres"] = None
            blk["bres"] = None
        blocks.append(blk)
        dilations.append(dil)
        dil *= 2
    key, kl1, kl2 = jax.random.split(key, 3)
    wlin = 0.1 * jax.random.normal(kl1, (reduced_size, out_channels), jnp.float32)
    blin = 0.1 * jax.random.normal(kl2, (1, out_channels), jnp.float32)
    return {"blocks": blocks, "dilations": dilations, "wlin": wlin, "blin": blin}


def prepare_params(raw, compute_dtype=jnp.bfloat16):
    """Zero-pad channels to lane-dense multiples of 128, fuse the K taps into a
    single (k*Cin_p, ·) contraction weight, and merge the 1x1 residual conv
    into conv1's output columns (it rides on the last tap, which is x[t])."""
    cdt = compute_dtype
    blocks = []
    for blk in raw["blocks"]:
        k, cin, cout = blk["w1"].shape
        cin_p, c_p = _pad_lanes(cin), _pad_lanes(cout)
        merged = blk["wres"] is not None
        ncols = 2 * c_p if merged else c_p
        w1 = jnp.zeros((k, cin_p, ncols), jnp.float32)
        w1 = w1.at[:, :cin, :cout].set(blk["w1"])
        if merged:
            w1 = w1.at[k - 1, :cin, c_p:c_p + cout].set(blk["wres"][0])
        w1 = w1.reshape(k * cin_p, ncols).astype(cdt)
        b1 = jnp.zeros((1, c_p), jnp.float32).at[:, :cout].set(blk["b1"])
        w2 = jnp.zeros((k, c_p, c_p), jnp.float32).at[:, :cout, :cout].set(blk["w2"])
        w2 = w2.reshape(k * c_p, c_p).astype(cdt)
        b2 = jnp.zeros((1, c_p), jnp.float32).at[:, :cout].set(blk["b2"])
        bres = (jnp.zeros((1, c_p), jnp.float32).at[:, :cout].set(blk["bres"])
                if merged else None)
        blocks.append({"w1": w1, "b1": b1, "w2": w2, "b2": b2, "bres": bres,
                       "merged": merged, "cin_p": cin_p, "c_p": c_p})
    R, OC = raw["wlin"].shape
    r_p, oc_p = _pad_lanes(R), _pad_lanes(OC)
    wlin = jnp.zeros((r_p, oc_p), jnp.float32).at[:R, :OC].set(
        raw["wlin"]).astype(cdt)
    blin = jnp.zeros((1, oc_p), jnp.float32).at[:, :OC].set(raw["blin"])
    return {"blocks": blocks, "dilations": raw["dilations"],
            "wlin": wlin, "blin": blin, "out_channels": OC}


# ----------------------------------------------------------------------------
# Pure-JAX reference (same math, unpadded fp32) for the correctness check
# ----------------------------------------------------------------------------
def _ref_conv(z, w, b, dd, act):
    k = w.shape[0]
    p = (k - 1) * dd
    L = z.shape[1]
    zp = jnp.pad(z, ((0, 0), (p, 0), (0, 0)))
    acc = jnp.zeros((z.shape[0], L, w.shape[2]), jnp.float32)
    for j in range(k):
        acc = acc + jnp.einsum("blc,co->blo", zp[:, j * dd:j * dd + L, :], w[j])
    acc = acc + b[None]
    if act:
        acc = jnp.where(acc >= 0, acc, NEG_SLOPE * acc)
    return acc


def ref_forward(x, params, kernel_size):
    h = jnp.transpose(x, (0, 2, 1))
    for blk, d in zip(params["blocks"], params["dilations"]):
        res = h if blk["wres"] is None else _ref_conv(h, blk["wres"], blk["bres"], 1, False)
        z = _ref_conv(h, blk["w1"], blk["b1"], d, True)
        z = _ref_conv(z, blk["w2"], blk["b2"], d, True)
        h = z + res
    pooled = jnp.max(h, axis=1)
    return pooled @ params["wlin"] + params["blin"]


# ----------------------------------------------------------------------------
if __name__ == "__main__":
    B, C_IN, L = 2, 4, 16
    CHANNELS, DEPTH, REDUCED, OUT_CH, KSIZE = 32, 2, 16, 8, 3

    key = jax.random.PRNGKey(0)
    kp, kx = jax.random.split(key)
    raw = init_params(kp, C_IN, CHANNELS, DEPTH, REDUCED, OUT_CH, KSIZE)
    x = jax.random.normal(kx, (B, C_IN, L), jnp.float32)     # PyTorch NCL layout

    y_ref = ref_forward(x, raw, KSIZE)

    # Exactness check: fp32 compute matches the fp32 reference tightly.
    prep32 = prepare_params(raw, compute_dtype=jnp.float32)
    y32 = jax.block_until_ready(
        causal_cnn_encoder(x, prep32, KSIZE, compute_dtype=jnp.float32))
    assert y32.shape == (B, OUT_CH), y32.shape
    assert jnp.allclose(y32, y_ref, atol=1e-4, rtol=1e-4), (y32, y_ref)

    # Default fast path: bf16 compute/staging, fp32 MXU accumulation.
    prep16 = prepare_params(raw)                              # bf16 by default
    y16 = jax.block_until_ready(causal_cnn_encoder(x, prep16, KSIZE))
    assert y16.shape == (B, OUT_CH), y16.shape
    assert jnp.allclose(y16, y_ref, atol=1e-1, rtol=1e-1), (y16, y_ref)

    print("KERNEL_OK")
</pallas_src>

<mosaic_0001>
module attributes {stable_mosaic.version = 11 : i64} {
  func.func @kernel(%arg0: i32, %arg1: i32, %arg2: memref<1x16x4xf32, #tpu.memory_space<vmem>>, %arg3: memref<384x256xf32, #tpu.memory_space<vmem>>, %arg4: memref<1x128xf32, #tpu.memory_space<vmem>>, %arg5: memref<384x128xf32, #tpu.memory_space<vmem>>, %arg6: memref<1x128xf32, #tpu.memory_space<vmem>>, %arg7: memref<1x128xf32, #tpu.memory_space<vmem>>, %arg8: memref<1x16x128xf32, #tpu.memory_space<vmem>>, %arg9: memref<18x128xf32, #tpu.memory_space<vmem>>, %arg10: memref<18x128xf32, #tpu.memory_space<vmem>>) attributes {dimension_semantics = [#tpu.dimension_semantics<parallel>, #tpu.dimension_semantics<arbitrary>], iteration_bounds = array<i64: 2, 1>, scalar_prefetch = 0 : i64, scratch_operands = 2 : i64, tpu.core_type = #tpu.core_type<tc>, window_params = [{transform_indices = @transform_0, window_bounds = array<i64: 1, 16, 4>}, {pipeline_mode = #tpu.pipeline_mode<synchronous>, transform_indices = @transform_1, window_bounds = array<i64: 384, 256>}, {pipeline_mode = #tpu.pipeline_mode<synchronous>, transform_indices = @transform_2, window_bounds = array<i64: 1, 128>}, {pipeline_mode = #tpu.pipeline_mode<synchronous>, transform_indices = @transform_3, window_bounds = array<i64: 384, 128>}, {pipeline_mode = #tpu.pipeline_mode<synchronous>, transform_indices = @transform_4, window_bounds = array<i64: 1, 128>}, {pipeline_mode = #tpu.pipeline_mode<synchronous>, transform_indices = @transform_5, window_bounds = array<i64: 1, 128>}, {transform_indices = @transform_6, window_bounds = array<i64: 1, 16, 128>}]} {
    %c0_i32 = arith.constant 0 : i32
    %0 = arith.cmpi eq, %arg1, %c0_i32 : i32
    %1 = arith.extui %0 : i1 to i32
    %c0_i32_0 = arith.constant 0 : i32
    %2 = arith.cmpi ne, %1, %c0_i32_0 : i32
    scf.if %2 {
      %cst_32 = arith.constant 0.000000e+00 : f32
      %44 = vector.broadcast %cst_32 : f32 to vector<18x128xf32>
      %c0_33 = arith.constant 0 : index
      %c0_34 = arith.constant 0 : index
      %45 = vector.load %arg9[%c0_33, %c0_34] : memref<18x128xf32, #tpu.memory_space<vmem>>, vector<18x128xf32>
      tpu.vector_store %arg9[%c0_33, %c0_34], %44 {strides = array<i32>} : memref<18x128xf32, #tpu.memory_space<vmem>>, vector<18x128xf32>,
      %cst_35 = arith.constant 0.000000e+00 : f32
      %46 = vector.broadcast %cst_35 : f32 to vector<18x128xf32>
      %c0_36 = arith.constant 0 : index
      %c0_37 = arith.constant 0 : index
      %47 = vector.load %arg10[%c0_36, %c0_37] : memref<18x128xf32, #tpu.memory_space<vmem>>, vector<18x128xf32>
      tpu.vector_store %arg10[%c0_36, %c0_37], %46 {strides = array<i32>} : memref<18x128xf32, #tpu.memory_space<vmem>>, vector<18x128xf32>,
    } else {
    }
    %c0 = arith.constant 0 : index
    %c0_1 = arith.constant 0 : index
    %c0_2 = arith.constant 0 : index
    %3 = vector.load %arg2[%c0, %c0_1, %c0_2] : memref<1x16x4xf32, #tpu.memory_space<vmem>>, vector<1x16x4xf32>
    %4 = vector.shape_cast %3 : vector<1x16x4xf32> to vector<16x4xf32>
    %cst = arith.constant 0.000000e+00 : f32
    %5 = vector.broadcast %cst : f32 to vector<16x124xf32>
    %6 = tpu.concatenate %4, %5 in 1 : vector<16x4xf32>, vector<16x124xf32> -> vector<16x128xf32>
    %c2 = arith.constant 2 : index
    %c0_3 = arith.constant 0 : index
    %7 = vector.load %arg9[%c2, %c0_3] : memref<18x128xf32, #tpu.memory_space<vmem>>, vector<16x128xf32>
    tpu.vector_store %arg9[%c2, %c0_3], %6 {strides = array<i32>} : memref<18x128xf32, #tpu.memory_space<vmem>>, vector<16x128xf32>,
    %c0_4 = arith.constant 0 : index
    %c0_5 = arith.constant 0 : index
    %8 = vector.load %arg9[%c0_4, %c0_5] : memref<18x128xf32, #tpu.memory_space<vmem>>, vector<16x128xf32>
    %c1 = arith.constant 1 : index
    %c0_6 = arith.constant 0 : index
    %9 = vector.load %arg9[%c1, %c0_6] : memref<18x128xf32, #tpu.memory_space<vmem>>, vector<16x128xf32>
    %10 = tpu.concatenate %8, %9, %6 in 1 : vector<16x128xf32>, vector<16x128xf32>, vector<16x128xf32> -> vector<16x384xf32>
    %c0_7 = arith.constant 0 : index
    %c0_8 = arith.constant 0 : index
    %11 = vector.load %arg3[%c0_7, %c0_8] : memref<384x256xf32, #tpu.memory_space<vmem>>, vector<384x256xf32>
    %cst_9 = arith.constant dense<0.000000e+00> : vector<16x256xf32>
    %12 = tpu.matmul %10, %11, %cst_9 {dimension_numbers = #tpu.dot_dimension_numbers<[1], [0], [0], [1], [0, 0, 1, 1], [], []>} : vector<16x384xf32>, vector<384x256xf32>, vector<16x256xf32> -> vector<16x256xf32>
    %13 = vector.extract_strided_slice %12 {offsets = [0, 0], sizes = [16, 128], strides = [1, 1]} : vector<16x256xf32> to vector<16x128xf32>
    %c0_10 = arith.constant 0 : index
    %c0_11 = arith.constant 0 : index
    %14 = vector.load %arg4[%c0_10, %c0_11] : memref<1x128xf32, #tpu.memory_space<vmem>>, vector<1x128xf32>
    %15 = vector.broadcast %14 : vector<1x128xf32> to vector<16x128xf32>
    %16 = arith.addf %13, %15 : vector<16x128xf32>
    %cst_12 = arith.constant 0.00999999977 : f32
    %17 = vector.broadcast %cst_12 : f32 to vector<16x128xf32>
    %18 = arith.mulf %17, %16 : vector<16x128xf32>
    %19 = arith.maximumf %16, %18 : vector<16x128xf32>
    %c2_13 = arith.constant 2 : index
    %c0_14 = arith.constant 0 : index
    %20 = vector.load %arg10[%c2_13, %c0_14] : memref<18x128xf32, #tpu.memory_space<vmem>>, vector<16x128xf32>
    tpu.vector_store %arg10[%c2_13, %c0_14], %19 {strides = array<i32>} : memref<18x128xf32, #tpu.memory_space<vmem>>, vector<16x128xf32>,
    %c0_15 = arith.constant 0 : index
    %c0_16 = arith.constant 0 : index
    %21 = vector.load %arg10[%c0_15, %c0_16] : memref<18x128xf32, #tpu.memory_space<vmem>>, vector<16x128xf32>
    %c1_17 = arith.constant 1 : index
    %c0_18 = arith.constant 0 : index
    %22 = vector.load %arg10[%c1_17, %c0_18] : memref<18x128xf32, #tpu.memory_space<vmem>>, vector<16x128xf32>
    %23 = tpu.concatenate %21, %22, %19 in 1 : vector<16x128xf32>, vector<16x128xf32>, vector<16x128xf32> -> vector<16x384xf32>
    %c0_19 = arith.constant 0 : index
    %c0_20 = arith.constant 0 : index
    %24 = vector.load %arg5[%c0_19, %c0_20] : memref<384x128xf32, #tpu.memory_space<vmem>>, vector<384x128xf32>
    %cst_21 = arith.constant dense<0.000000e+00> : vector<16x128xf32>
    %25 = tpu.matmul %23, %24, %cst_21 {dimension_numbers = #tpu.dot_dimension_numbers<[1], [0], [0], [1], [0, 0, 1, 1], [], []>} : vector<16x384xf32>, vector<384x128xf32>, vector<16x128xf32> -> vector<16x128xf32>
    %c0_22 = arith.constant 0 : index
    %c0_23 = arith.constant 0 : index
    %26 = vector.load %arg6[%c0_22, %c0_23] : memref<1x128xf32, #tpu.memory_space<vmem>>, vector<1x128xf32>
    %27 = vector.broadcast %26 : vector<1x128xf32> to vector<16x128xf32>
    %28 = arith.addf %25, %27 : vector<16x128xf32>
    %cst_24 = arith.constant 0.00999999977 : f32
    %29 = vector.broadcast %cst_24 : f32 to vector<16x128xf32>
    %30 = arith.mulf %29, %28 : vector<16x128xf32>
    %31 = arith.maximumf %28, %30 : vector<16x128xf32>
    %32 = vector.extract_strided_slice %12 {offsets = [0, 128], sizes = [16, 128], strides = [1, 1]} : vector<16x256xf32> to vector<16x128xf32>
    %c0_25 = arith.constant 0 : index
    %c0_26 = arith.constant 0 : index
    %33 = vector.load %arg7[%c0_25, %c0_26] : memref<1x128xf32, #tpu.memory_space<vmem>>, vector<1x128xf32>
    %34 = vector.broadcast %33 : vector<1x128xf32> to vector<16x128xf32>
    %35 = arith.addf %32, %34 : vector<16x128xf32>
    %36 = arith.addf %31, %35 : vector<16x128xf32>
    %c1_i32 = arith.constant 1 : i32
    %37 = arith.addi %arg1, %c1_i32 : i32
    %c1_i32_27 = arith.constant 1 : i32
    %38 = arith.cmpi slt, %37, %c1_i32_27 : i32
    %39 = arith.extui %38 : i1 to i32
    %c0_i32_28 = arith.constant 0 : i32
    %40 = arith.cmpi ne, %39, %c0_i32_28 : i32
    scf.if %40 {
      %44 = vector.extract_strided_slice %6 {offsets = [14, 0], sizes = [2, 128], strides = [1, 1]} : vector<16x128xf32> to vector<2x128xf32>
      %c0_32 = arith.constant 0 : index
      %c0_33 = arith.constant 0 : index
      %45 = vector.load %arg9[%c0_32, %c0_33] : memref<18x128xf32, #tpu.memory_space<vmem>>, vector<2x128xf32>
      tpu.vector_store %arg9[%c0_32, %c0_33], %44 {strides = array<i32>} : memref<18x128xf32, #tpu.memory_space<vmem>>, vector<2x128xf32>,
      %46 = vector.extract_strided_slice %19 {offsets = [14, 0], sizes = [2, 128], strides = [1, 1]} : vector<16x128xf32> to vector<2x128xf32>
      %c0_34 = arith.constant 0 : index
      %c0_35 = arith.constant 0 : index
      %47 = vector.load %arg10[%c0_34, %c0_35] : memref<18x128xf32, #tpu.memory_space<vmem>>, vector<2x128xf32>
      tpu.vector_store %arg10[%c0_34, %c0_35], %46 {strides = array<i32>} : memref<18x128xf32, #tpu.memory_space<vmem>>, vector<2x128xf32>,
    } else {
    }
    %c0_29 = arith.constant 0 : index
    %c0_30 = arith.constant 0 : index
    %c0_31 = arith.constant 0 : index
    %41 = vector.load %arg8[%c0_29, %c0_30, %c0_31] : memref<1x16x128xf32, #tpu.memory_space<vmem>>, vector<1x16x128xf32>
    %42 = vector.shape_cast %41 : vector<1x16x128xf32> to vector<16x128xf32>
    %43 = vector.shape_cast %36 : vector<16x128xf32> to vector<1x16x128xf32>
    tpu.vector_store %arg8[%c0_29, %c0_30, %c0_31], %43 {strides = array<i32>} : memref<1x16x128xf32, #tpu.memory_space<vmem>>, vector<1x16x128xf32>,
    return
  }
  func.func @transform_0(%arg0: i32, %arg1: i32) -> (i32, i32, i32) {
    %c0_i32 = arith.constant 0 : i32
    %c0_i32_0 = arith.constant 0 : i32
    return %arg0, %arg1, %c0_i32 : i32, i32, i32
  }
  func.func @transform_1(%arg0: i32, %arg1: i32) -> (i32, i32) {
    %c0_i32 = arith.constant 0 : i32
    %c0_i32_0 = arith.constant 0 : i32
    %c0_i32_1 = arith.constant 0 : i32
    return %c0_i32, %c0_i32_0 : i32, i32
  }
  func.func @transform_2(%arg0: i32, %arg1: i32) -> (i32, i32) {
    %c0_i32 = arith.constant 0 : i32
    %c0_i32_0 = arith.constant 0 : i32
    %c0_i32_1 = arith.constant 0 : i32
    return %c0_i32, %c0_i32_0 : i32, i32
  }
  func.func @transform_3(%arg0: i32, %arg1: i32) -> (i32, i32) {
    %c0_i32 = arith.constant 0 : i32
    %c0_i32_0 = arith.constant 0 : i32
    %c0_i32_1 = arith.constant 0 : i32
    return %c0_i32, %c0_i32_0 : i32, i32
  }
  func.func @transform_4(%arg0: i32, %arg1: i32) -> (i32, i32) {
    %c0_i32 = arith.constant 0 : i32
    %c0_i32_0 = arith.constant 0 : i32
    %c0_i32_1 = arith.constant 0 : i32
    return %c0_i32, %c0_i32_0 : i32, i32
  }
  func.func @transform_5(%arg0: i32, %arg1: i32) -> (i32, i32) {
    %c0_i32 = arith.constant 0 : i32
    %c0_i32_0 = arith.constant 0 : i32
    %c0_i32_1 = arith.constant 0 : i32
    return %c0_i32, %c0_i32_0 : i32, i32
  }
  func.func @transform_6(%arg0: i32, %arg1: i32) -> (i32, i32, i32) {
    %c0_i32 = arith.constant 0 : i32
    %c0_i32_0 = arith.constant 0 : i32
    return %arg0, %arg1, %c0_i32 : i32, i32, i32
  }
}

</mosaic_0001>

<llo_original>
// kernel: tpu_custom_call.1
$region0: #{tpu_custom_call.1}
  #allocation0 [shape = 'u32[]', space=smem, size = 0x4, offset = 0x4, fixed_abs, tag = 'smem constant byte address 0x4 - core index']
  #allocation1 [shape = 'u32[144,128]{1,0:T(1,128)}', space=vmem, size = 0x12000, scoped, tag = 'internal scratch']
  #allocation2 [shape = 'f32[18,128]{1,0:T(8,128)}', space=vmem, size = 0x3000, scoped, tag = 'scratch operand']
  #allocation3 [shape = 'f32[18,128]{1,0:T(8,128)}', space=vmem, size = 0x3000, scoped, tag = 'scratch operand']
  %s0 = inlined_call_operand.vmem [shape: f32[2,16,4], index: 0, kind: input, shape index: {}]
  %s1 = inlined_call_operand.hbm [shape: f32[384,256], index: 1, kind: input, shape index: {}]
  %s2 = inlined_call_operand.vmem [shape: f32[1,128], index: 2, kind: input, shape index: {}]
  %s3 = inlined_call_operand.hbm [shape: f32[384,128], index: 3, kind: input, shape index: {}]
  %s4 = inlined_call_operand.vmem [shape: f32[1,128], index: 4, kind: input, shape index: {}]
  %s5 = inlined_call_operand.vmem [shape: f32[1,128], index: 5, kind: input, shape index: {}]
  %s6 = inlined_call_operand.hbm [shape: f32[2,16,128], index: 6, kind: output, shape index: {}]
  %s7 = sld [smem:[#allocation0]]
  $region73: #{tpu_custom_call.1} parent=0
    _
  %s9 = ssub.s32 1, %s7
  %s10 = scalar_select 0, %s9, %s7
  $region1: #{tpu_custom_call.1} parent=0
    #allocation4 [shape = 'u8[393216]{0}', space=vmem, size = 0x60000, scoped, tag = 'input window, operand 1, single buffered']
    #allocation5 [shape = 's32[2]{0}', space=sflag, size = 0x8, scoped, tag = 'scoped memory for tpu_custom_call.1']
    #allocation6 [shape = 's32[2]{0}', space=sflag, size = 0x8, scoped, tag = 'scoped memory for tpu_custom_call.1']
    #allocation7 [shape = 'u8[196608]{0}', space=vmem, size = 0x30000, scoped, tag = 'input window, operand 3, single buffered']
    #allocation8 [shape = 's32[1]{0}', space=sflag, size = 0x4, scoped, tag = 'scoped memory for tpu_custom_call.1']
    #allocation9 [shape = 'u8[16384]{0}', space=vmem, size = 0x4000, scoped, tag = 'output window, operand 0']
    %11 = vsyncpa [#allocation5], 0
    %12 = vsyncpa [#allocation8], 0
    %13 = vsyncpa [#allocation6], 0
    %s14 = scalar_lea.sflag [#allocation6], 1
    %15 = vsyncpa %s14, 0
    loop: start=0, step=1, limit=4
    $region2: #{tpu_custom_call.1} parent=1 // loop_pre_header
      _
    $region3: #{tpu_custom_call.1} parent=1 // loop_header
      %s17 = sphi 0, %s21
      %p18 = scmp.ge.s32.totalorder %s17, 4
      %s24 = sphi 0, %s36
      %s25 = sphi 0, %s32
      %s26 = sphi 0, %s24
      %s27 = sphi 0, %s25
      %s28 = sphi 0, %s26
      %s29 = sphi 0, %s27
      %s41 = sphi 0, %s43
      %s44 = sphi 0, %s41
      %s45 = sphi 0, %s44
      %s61 = sphi 0, %s45
      %s65 = sphi 0, %s65
      %s67 = sphi 0, %s65
      %s68 = sphi 0, %s67
      %s82 = sphi 0, %s68
      %s86 = sphi 0, %s86
      %s88 = sphi 0, %s86
      %s89 = sphi 0, %s88
      %s103 = sphi 0, %s89
      %s107 = sphi 0, %s107
      %s109 = sphi 0, %s107
      %s110 = sphi 0, %s109
      %s124 = sphi 0, %s110
      %s128 = sphi 0, %s128
      %s130 = sphi 0, %s128
      %s131 = sphi 0, %s130
      %s145 = sphi 0, %s131
      %s149 = sphi 0, %s149
      %s151 = sphi 0, %s149
      %s152 = sphi 0, %s151
      %s166 = sphi 0, %s152
      %s174 = sphi 0, %s176
      %s177 = sphi 0, %s174
      %s178 = sphi 0, %s177
      %s194 = sphi 0, %s178
    $region4: #{tpu_custom_call.1} parent=1 // loop_header_branch
      %20 = sbr.rel (%p18) target = $region8
    $region5: #{tpu_custom_call.1} parent=1 // loop_body
      %s22 = ssub.s32 %s17, 1
      %s23 = ssub.s32 %s17, 2
      %s30 = sadd.s32 1, %s25
      %p31 = scmp.ge.s32.totalorder %s30, 1
      %s32 = scalar_select %p31, 0, %s30
      %s33 = sadd.s32 1, %s24
      %s34 = scalar_select %p31, %s33, %s24
      %p35 = scmp.ge.s32.totalorder %s34, 2
      %s36 = scalar_select %p35, 0, %s34
      %s37 = ssub.s32 %s24, %s36
      %s38 = ssub.s32 %s25, %s32
      %s39 = sor.u32 %s37, %s38
      %p40 = scmp.eq.s32.totalorder %s39, 0
      %s42 = sadd.s32 %s41, 1
      %s43 = scalar_select %p40, %s41, %s42
      %p46 = pneg %p40
      %p47 = scmp.eq.s32.totalorder %s17, 1
      %p48 = por %p46, %p47
      %p49 = scmp.ne.s32.totalorder %s41, %s44
      %p50 = scmp.eq.s32.totalorder %s17, 0
      %p51 = por %p49, %p50
      %p52 = scmp.ne.s32.totalorder %s41, %s44
      %p53 = scmp.eq.s32.totalorder %s22, 1
      %p54 = por %p52, %p53
      %p55 = scmp.ne.s32.totalorder %s44, %s45
      %p56 = scmp.eq.s32.totalorder %s22, 0
      %p57 = por %p55, %p56
      %p58 = scmp.ne.s32.totalorder %s44, %s45
      %p59 = scmp.eq.s32.totalorder %s23, 1
      %p60 = por %p58, %p59
      %p62 = scmp.ne.s32.totalorder %s45, %s61
      %p63 = scmp.eq.s32.totalorder %s23, 0
      %p64 = por %p62, %p63
      %s66 = sadd.s32 %s65, 1
      %p69 = scmp.eq.s32.totalorder %s17, 1
      %p70 = scmp.ne.s32.totalorder %s65, %s67
      %p71 = scmp.eq.s32.totalorder %s17, 0
      %p72 = por %p70, %p71
      %p73 = scmp.ne.s32.totalorder %s65, %s67
      %p74 = scmp.eq.s32.totalorder %s22, 1
      %p75 = por %p73, %p74
      %p76 = scmp.ne.s32.totalorder %s67, %s68
      %p77 = scmp.eq.s32.totalorder %s22, 0
      %p78 = por %p76, %p77
      %p79 = scmp.ne.s32.totalorder %s67, %s68
      %p80 = scmp.eq.s32.totalorder %s23, 1
      %p81 = por %p79, %p80
      %p83 = scmp.ne.s32.totalorder %s68, %s82
      %p84 = scmp.eq.s32.totalorder %s23, 0
      %p85 = por %p83, %p84
      %s87 = sadd.s32 %s86, 1
      %p90 = scmp.eq.s32.totalorder %s17, 1
      %p91 = scmp.ne.s32.totalorder %s86, %s88
      %p92 = scmp.eq.s32.totalorder %s17, 0
      %p93 = por %p91, %p92
      %p94 = scmp.ne.s32.totalorder %s86, %s88
      %p95 = scmp.eq.s32.totalorder %s22, 1
      %p96 = por %p94, %p95
      %p97 = scmp.ne.s32.totalorder %s88, %s89
      %p98 = scmp.eq.s32.totalorder %s22, 0
      %p99 = por %p97, %p98
      %p100 = scmp.ne.s32.totalorder %s88, %s89
      %p101 = scmp.eq.s32.totalorder %s23, 1
      %p102 = por %p100, %p101
      %p104 = scmp.ne.s32.totalorder %s89, %s103
      %p105 = scmp.eq.s32.totalorder %s23, 0
      %p106 = por %p104, %p105
      %s108 = sadd.s32 %s107, 1
      %p111 = scmp.eq.s32.totalorder %s17, 1
      %p112 = scmp.ne.s32.totalorder %s107, %s109
      %p113 = scmp.eq.s32.totalorder %s17, 0
      %p114 = por %p112, %p113
      %p115 = scmp.ne.s32.totalorder %s107, %s109
      %p116 = scmp.eq.s32.totalorder %s22, 1
      %p117 = por %p115, %p116
      %p118 = scmp.ne.s32.totalorder %s109, %s110
      %p119 = scmp.eq.s32.totalorder %s22, 0
      %p120 = por %p118, %p119
      %p121 = scmp.ne.s32.totalorder %s109, %s110
      %p122 = scmp.eq.s32.totalorder %s23, 1
      %p123 = por %p121, %p122
      %p125 = scmp.ne.s32.totalorder %s110, %s124
      %p126 = scmp.eq.s32.totalorder %s23, 0
      %p127 = por %p125, %p126
      %s129 = sadd.s32 %s128, 1
      %p132 = scmp.eq.s32.totalorder %s17, 1
      %p133 = scmp.ne.s32.totalorder %s128, %s130
      %p134 = scmp.eq.s32.totalorder %s17, 0
      %p135 = por %p133, %p134
      %p136 = scmp.ne.s32.totalorder %s128, %s130
      %p137 = scmp.eq.s32.totalorder %s22, 1
      %p138 = por %p136, %p137
      %p139 = scmp.ne.s32.totalorder %s130, %s131
      %p140 = scmp.eq.s32.totalorder %s22, 0
      %p141 = por %p139, %p140
      %p142 = scmp.ne.s32.totalorder %s130, %s131
      %p143 = scmp.eq.s32.totalorder %s23, 1
      %p144 = por %p142, %p143
      %p146 = scmp.ne.s32.totalorder %s131, %s145
      %p147 = scmp.eq.s32.totalorder %s23, 0
      %p148 = por %p146, %p147
      %s150 = sadd.s32 %s149, 1
      %p153 = scmp.eq.s32.totalorder %s17, 1
      %p154 = scmp.ne.s32.totalorder %s149, %s151
      %p155 = scmp.eq.s32.totalorder %s17, 0
      %p156 = por %p154, %p155
      %p157 = scmp.ne.s32.totalorder %s149, %s151
      %p158 = scmp.eq.s32.totalorder %s22, 1
      %p159 = por %p157, %p158
      %p160 = scmp.ne.s32.totalorder %s151, %s152
      %p161 = scmp.eq.s32.totalorder %s22, 0
      %p162 = por %p160, %p161
      %p163 = scmp.ne.s32.totalorder %s151, %s152
      %p164 = scmp.eq.s32.totalorder %s23, 1
      %p165 = por %p163, %p164
      %p167 = scmp.ne.s32.totalorder %s152, %s166
      %p168 = scmp.eq.s32.totalorder %s23, 0
      %p169 = por %p167, %p168
      %s170 = ssub.s32 %s24, %s36
      %s171 = ssub.s32 %s25, %s32
      %s172 = sor.u32 %s170, %s171
      %p173 = scmp.eq.s32.totalorder %s172, 0
      %s175 = sadd.s32 %s174, 1
      %s176 = scalar_select %p173, %s174, %s175
      %p179 = pneg %p173
      %p180 = scmp.eq.s32.totalorder %s17, 1
      %p181 = por %p179, %p180
      %p182 = scmp.ne.s32.totalorder %s174, %s177
      %p183 = scmp.eq.s32.totalorder %s17, 0
      %p184 = por %p182, %p183
      %p185 = scmp.ne.s32.totalorder %s174, %s177
      %p186 = scmp.eq.s32.totalorder %s22, 1
      %p187 = por %p185, %p186
      %p188 = scmp.ne.s32.totalorder %s177, %s178
      %p189 = scmp.eq.s32.totalorder %s22, 0
      %p190 = por %p188, %p189
      %p191 = scmp.ne.s32.totalorder %s177, %s178
      %p192 = scmp.eq.s32.totalorder %s23, 1
      %p193 = por %p191, %p192
      %p195 = scmp.ne.s32.totalorder %s178, %s194
      %p196 = scmp.eq.s32.totalorder %s23, 0
      %p197 = por %p195, %p196
      %p198 = scmp.le.s32.totalorder 1, %s17
      %p199 = scmp.lt.s32.totalorder %s17, 3
      %p200 = pnand %p198, %p199
      %p201 = pneg %p200
      // Predicated region
      $region9: #{tpu_custom_call.1} parent=5 // pred_check
        _
      $region10: #{tpu_custom_call.1} parent=5 // pred_check_branch
        %203 = sbr.rel (%p200) target = $region12
      $region11: #{tpu_custom_call.1} parent=5 // pred_region
        %s204 = ssub.s32 %s17, 1
        // Predicated region
        $region13: #{tpu_custom_call.1} parent=11 // pred_check
          %p205 = pneg %p78
        $region14: #{tpu_custom_call.1} parent=11 // pred_check_branch
          %207 = sbr.rel (%p205) target = $region16
        $region15: #{tpu_custom_call.1} parent=11 // pred_region
          %s209 = ssub.s32 12288, 12288
          %210 = vsyncadd [#allocation5], %s209
          %s211 = sshll.u32 [#allocation4], 4
          %s212 = int_to_ptr.vmem [resolvable:$true] %s211
          %217 = dma.hbm_to_vmem [thread:$0]  %s1, 12288, %s212, [#allocation5], 256, 256, 16
        $region16: #{tpu_custom_call.1} parent=11 // pred_fallthru
          _
        // Predicated region
        $region17: #{tpu_custom_call.1} parent=11 // pred_check
          %p218 = pneg %p99
        $region18: #{tpu_custom_call.1} parent=11 // pred_check_branch
          %220 = sbr.rel (%p218) target = $region20
        $region19: #{tpu_custom_call.1} parent=11 // pred_region
          _
        $region20: #{tpu_custom_call.1} parent=11 // pred_fallthru
          _
        // Predicated region
        $region21: #{tpu_custom_call.1} parent=11 // pred_check
          %p221 = pneg %p120
        $region22: #{tpu_custom_call.1} parent=11 // pred_check_branch
          %223 = sbr.rel (%p221) target = $region24
        $region23: #{tpu_custom_call.1} parent=11 // pred_region
          %s225 = ssub.s32 6144, 6144
          %226 = vsyncadd [#allocation8], %s225
          %s227 = sshll.u32 [#allocation7], 4
          %s228 = int_to_ptr.vmem [resolvable:$true] %s227
          %233 = dma.hbm_to_vmem [thread:$0]  %s3, 6144, %s228, [#allocation8], 128, 128, 8
        $region24: #{tpu_custom_call.1} parent=11 // pred_fallthru
          _
        // Predicated region
        $region25: #{tpu_custom_call.1} parent=11 // pred_check
          %p234 = pneg %p141
        $region26: #{tpu_custom_call.1} parent=11 // pred_check_branch
          %236 = sbr.rel (%p234) target = $region28
        $region27: #{tpu_custom_call.1} parent=11 // pred_region
          _
        $region28: #{tpu_custom_call.1} parent=11 // pred_fallthru
          _
        // Predicated region
        $region29: #{tpu_custom_call.1} parent=11 // pred_check
          %p237 = pneg %p162
        $region30: #{tpu_custom_call.1} parent=11 // pred_check_branch
          %239 = sbr.rel (%p237) target = $region32
        $region31: #{tpu_custom_call.1} parent=11 // pred_region
          _
        $region32: #{tpu_custom_call.1} parent=11 // pred_fallthru
          _
      $region12: #{tpu_custom_call.1} parent=5 // pred_fallthru
        _
      %p240 = scmp.lt.s32.totalorder %s17, 2
      // Predicated region
      $region33: #{tpu_custom_call.1} parent=5 // pred_check
        %p241 = pneg %p240
      $region34: #{tpu_custom_call.1} parent=5 // pred_check_branch
        %243 = sbr.rel (%p241) target = $region36
      $region35: #{tpu_custom_call.1} parent=5 // pred_region
        // Predicated region
        $region37: #{tpu_custom_call.1} parent=35 // pred_check
          %p244 = pneg %p51
        $region38: #{tpu_custom_call.1} parent=35 // pred_check_branch
          %246 = sbr.rel (%p244) target = $region40
        $region39: #{tpu_custom_call.1} parent=35 // pred_region
          %s247 = smul.u32 2, %s25
          %p248 = scmp.lt.s32.totalorder %s24, 1
          %s249 = scalar_select %p248, %s24, 1
          %p250 = scmp.lt.s32.totalorder %s247, 1
          %s251 = scalar_select %p250, %s247, 1
          %s252 = smul.addr %s249, 2
          %s253 = sadd.s32 %s251, %s252
          %s254 = smul.addr %s253, 8
          %s255 = scalar_lea.vmem %s0, %s254
          %s256 = smul.u32 2, %s25
        $region40: #{tpu_custom_call.1} parent=35 // pred_fallthru
          _
      $region36: #{tpu_custom_call.1} parent=5 // pred_fallthru
        _
      %p257 = scmp.le.s32.totalorder 1, %s17
      %p258 = scmp.lt.s32.totalorder %s17, 3
      %p259 = pnand %p257, %p258
      %p260 = pneg %p259
      // Predicated region
      $region41: #{tpu_custom_call.1} parent=5 // pred_check
        _
      $region42: #{tpu_custom_call.1} parent=5 // pred_check_branch
        %262 = sbr.rel (%p259) target = $region44
      $region43: #{tpu_custom_call.1} parent=5 // pred_region
        %s263 = ssub.s32 %s17, 1
        // Predicated region
        $region45: #{tpu_custom_call.1} parent=43 // pred_check
          %p264 = pneg %p78
        $region46: #{tpu_custom_call.1} parent=43 // pred_check_branch
          %266 = sbr.rel (%p264) target = $region48
        $region47: #{tpu_custom_call.1} parent=43 // pred_region
          %267 = dma.done [#allocation5], 12288
        $region48: #{tpu_custom_call.1} parent=43 // pred_fallthru
          _
        // Predicated region
        $region49: #{tpu_custom_call.1} parent=43 // pred_check
          %p268 = pneg %p120
        $region50: #{tpu_custom_call.1} parent=43 // pred_check_branch
          %270 = sbr.rel (%p268) target = $region52
        $region51: #{tpu_custom_call.1} parent=43 // pred_region
          %271 = dma.done [#allocation8], 6144
        $region52: #{tpu_custom_call.1} parent=43 // pred_fallthru
          _
        %s272 = smul.u32 2, %s27
        %p273 = scmp.lt.s32.totalorder %s26, 1
        %s274 = scalar_select %p273, %s26, 1
        %p275 = scmp.lt.s32.totalorder %s272, 1
        %s276 = scalar_select %p275, %s272, 1
        %s277 = smul.addr %s274, 2
        %s278 = sadd.s32 %s276, %s277
        %s279 = smul.addr %s278, 8
        %s280 = scalar_lea.vmem %s0, %s279
        %p281 = pneg %p57
        %p282 = pneg %p54
        %p283 = pneg %p78
        %p284 = pneg %p75
        %p285 = pneg %p99
        %p286 = pneg %p96
        %p287 = pneg %p120
        %p288 = pneg %p117
        %p289 = pneg %p141
        %p290 = pneg %p138
        %p291 = pneg %p162
        %p292 = pneg %p159
        %p293 = pneg %p190
        %p294 = pneg %p187
        %s295 = sand.u32 %s177, 1
        %s296 = scalar_lea.sflag [#allocation6], %s295
        %s297 = sand.u32 %s177, 1
        %s298 = smul.addr %s297, 16
        %s299 = scalar_lea.vmem [#allocation9], %s298
        %s300 = smul.u32 2, %s27
        %p301 = scmp.lt.s32.totalorder %s26, 1
        %s302 = scalar_select %p301, %s26, 1
        %p303 = scmp.lt.s32.totalorder %s300, 1
        %s304 = scalar_select %p303, %s300, 1
        %s305 = smul.addr %s302, 2
        %s306 = sadd.s32 %s304, %s305
        %s307 = smul.addr %s306, 8
        %s308 = scalar_lea.vmem %s0, %s307
        %s309 = smul.u32 2, %s27
        %s310 = smul.u32 2, %s27
        %p311 = scmp.eq.s32.totalorder %s27, 0
        // Predicated region
        $region53: #{tpu_custom_call.1} parent=43 // pred_check
          %p312 = pneg %p311
        $region54: #{tpu_custom_call.1} parent=43 // pred_check_branch
          %314 = sbr.rel (%p312) target = $region56
        $region55: #{tpu_custom_call.1} parent=43 // pred_region
          %315 = vst [vmem:[#allocation2] sm:$0xff] 0.0
          %316 = vst [vmem:[#allocation2 + $0x8] sm:$0xff] 0.0
          %317 = vst [vmem:[#allocation2 + $0x10] sm:$0x3] 0.0
          %318 = vst [vmem:[#allocation3] sm:$0xff] 0.0
          %319 = vst [vmem:[#allocation3 + $0x8] sm:$0xff] 0.0
          %320 = vst [vmem:[#allocation3 + $0x10] sm:$0x3] 0.0
        $region56: #{tpu_custom_call.1} parent=43 // pred_fallthru
          _
        %v321 = vld [vmem:[%s308] sm:$0xff]
        %v322 = vld [vmem:[%s308 + $0x8] sm:$0xff]
        %vm323 = vcmask 31744
        %v324 = vsel %vm323, %v321, 0.0
        %v325 = vsel %vm323, %v322, 0.0
        %326 = vst [vmem:[#allocation2 + $0x2] sm:$0xff] %v324
        %327 = vst [vmem:[#allocation2 + $0xa] sm:$0xff] %v325
        %v328 = vld [vmem:[#allocation2] sm:$0xff]
        %v329 = vld [vmem:[#allocation2 + $0x8] sm:$0xff]
        %v330 = vld [vmem:[#allocation2 + $0x1] sm:$0xff]
        %v331 = vld [vmem:[#allocation2 + $0x9] sm:$0xff]
        %v332 = vld [vmem:[#allocation4] sm:$0xff]
        %v333 = vld [vmem:[#allocation4 + $0x8] sm:$0xff]
        %v334 = vld [vmem:[#allocation4 + $0x10] sm:$0xff]
        %v335 = vld [vmem:[#allocation4 + $0x18] sm:$0xff]
        %v336 = vld [vmem:[#allocation4 + $0x20] sm:$0xff]
        %v337 = vld [vmem:[#allocation4 + $0x28] sm:$0xff]
        %v338 = vld [vmem:[#allocation4 + $0x30] sm:$0xff]
        %v339 = vld [vmem:[#allocation4 + $0x38] sm:$0xff]
        %v340 = vld [vmem:[#allocation4 + $0x40] sm:$0xff]
        %v341 = vld [vmem:[#allocation4 + $0x48] sm:$0xff]
        %v342 = vld [vmem:[#allocation4 + $0x50] sm:$0xff]
        %v343 = vld [vmem:[#allocation4 + $0x58] sm:$0xff]
        %v344 = vld [vmem:[#allocation4 + $0x60] sm:$0xff]
        %v345 = vld [vmem:[#allocation4 + $0x68] sm:$0xff]
        %v346 = vld [vmem:[#allocation4 + $0x70] sm:$0xff]
        %v347 = vld [vmem:[#allocation4 + $0x78] sm:$0xff]
        %v348 = vld [vmem:[#allocation4 + $0x80] sm:$0xff]
        %v349 = vld [vmem:[#allocation4 + $0x88] sm:$0xff]
        %v350 = vld [vmem:[#allocation4 + $0x90] sm:$0xff]
        %v351 = vld [vmem:[#allocation4 + $0x98] sm:$0xff]
        %v352 = vld [vmem:[#allocation4 + $0xa0] sm:$0xff]
        %v353 = vld [vmem:[#allocation4 + $0xa8] sm:$0xff]
        %v354 = vld [vmem:[#allocation4 + $0xb0] sm:$0xff]
        %v355 = vld [vmem:[#allocation4 + $0xb8] sm:$0xff]
        %v356 = vld [vmem:[#allocation4 + $0xc0] sm:$0xff]
        %v357 = vld [vmem:[#allocation4 + $0xc8] sm:$0xff]
        %v358 = vld [vmem:[#allocation4 + $0xd0] sm:$0xff]
        %v359 = vld [vmem:[#allocation4 + $0xd8] sm:$0xff]
        %v360 = vld [vmem:[#allocation4 + $0xe0] sm:$0xff]
        %v361 = vld [vmem:[#allocation4 + $0xe8] sm:$0xff]
        %v362 = vld [vmem:[#allocation4 + $0xf0] sm:$0xff]
        %v363 = vld [vmem:[#allocation4 + $0xf8] sm:$0xff]
        %v364 = vld [vmem:[#allocation4 + $0x100] sm:$0xff]
        %v365 = vld [vmem:[#allocation4 + $0x108] sm:$0xff]
        %v366 = vld [vmem:[#allocation4 + $0x110] sm:$0xff]
        %v367 = vld [vmem:[#allocation4 + $0x118] sm:$0xff]
        %v368 = vld [vmem:[#allocation4 + $0x120] sm:$0xff]
        %v369 = vld [vmem:[#allocation4 + $0x128] sm:$0xff]
        %v370 = vld [vmem:[#allocation4 + $0x130] sm:$0xff]
        %v371 = vld [vmem:[#allocation4 + $0x138] sm:$0xff]
        %v372 = vld [vmem:[#allocation4 + $0x140] sm:$0xff]
        %v373 = vld [vmem:[#allocation4 + $0x148] sm:$0xff]
        %v374 = vld [vmem:[#allocation4 + $0x150] sm:$0xff]
        %v375 = vld [vmem:[#allocation4 + $0x158] sm:$0xff]
        %v376 = vld [vmem:[#allocation4 + $0x160] sm:$0xff]
        %v377 = vld [vmem:[#allocation4 + $0x168] sm:$0xff]
        %v378 = vld [vmem:[#allocation4 + $0x170] sm:$0xff]
        %v379 = vld [vmem:[#allocation4 + $0x178] sm:$0xff]
        %v380 = vld [vmem:[#allocation4 + $0x180] sm:$0xff]
        %v381 = vld [vmem:[#allocation4 + $0x188] sm:$0xff]
        %v382 = vld [vmem:[#allocation4 + $0x190] sm:$0xff]
        %v383 = vld [vmem:[#allocation4 + $0x198] sm:$0xff]
        %v384 = vld [vmem:[#allocation4 + $0x1a0] sm:$0xff]
        %v385 = vld [vmem:[#allocation4 + $0x1a8] sm:$0xff]
        %v386 = vld [vmem:[#allocation4 + $0x1b0] sm:$0xff]
        %v387 = vld [vmem:[#allocation4 + $0x1b8] sm:$0xff]
        %v388 = vld [vmem:[#allocation4 + $0x1c0] sm:$0xff]
        %v389 = vld [vmem:[#allocation4 + $0x1c8] sm:$0xff]
        %v390 = vld [vmem:[#allocation4 + $0x1d0] sm:$0xff]
        %v391 = vld [vmem:[#allocation4 + $0x1d8] sm:$0xff]
        %v392 = vld [vmem:[#allocation4 + $0x1e0] sm:$0xff]
        %v393 = vld [vmem:[#allocation4 + $0x1e8] sm:$0xff]
        %v394 = vld [vmem:[#allocation4 + $0x1f0] sm:$0xff]
        %v395 = vld [vmem:[#allocation4 + $0x1f8] sm:$0xff]
        %v396 = vld [vmem:[#allocation4 + $0x200] sm:$0xff]
        %v397 = vld [vmem:[#allocation4 + $0x208] sm:$0xff]
        %v398 = vld [vmem:[#allocation4 + $0x210] sm:$0xff]
        %v399 = vld [vmem:[#allocation4 + $0x218] sm:$0xff]
        %v400 = vld [vmem:[#allocation4 + $0x220] sm:$0xff]
        %v401 = vld [vmem:[#allocation4 + $0x228] sm:$0xff]
        %v402 = vld [vmem:[#allocation4 + $0x230] sm:$0xff]
        %v403 = vld [vmem:[#allocation4 + $0x238] sm:$0xff]
        %v404 = vld [vmem:[#allocation4 + $0x240] sm:$0xff]
        %v405 = vld [vmem:[#allocation4 + $0x248] sm:$0xff]
        %v406 = vld [vmem:[#allocation4 + $0x250] sm:$0xff]
        %v407 = vld [vmem:[#allocation4 + $0x258] sm:$0xff]
        %v408 = vld [vmem:[#allocation4 + $0x260] sm:$0xff]
        %v409 = vld [vmem:[#allocation4 + $0x268] sm:$0xff]
        %v410 = vld [vmem:[#allocation4 + $0x270] sm:$0xff]
        %v411 = vld [vmem:[#allocation4 + $0x278] sm:$0xff]
        %v412 = vld [vmem:[#allocation4 + $0x280] sm:$0xff]
        %v413 = vld [vmem:[#allocation4 + $0x288] sm:$0xff]
        %v414 = vld [vmem:[#allocation4 + $0x290] sm:$0xff]
        %v415 = vld [vmem:[#allocation4 + $0x298] sm:$0xff]
        %v416 = vld [vmem:[#allocation4 + $0x2a0] sm:$0xff]
        %v417 = vld [vmem:[#allocation4 + $0x2a8] sm:$0xff]
        %v418 = vld [vmem:[#allocation4 + $0x2b0] sm:$0xff]
        %v419 = vld [vmem:[#allocation4 + $0x2b8] sm:$0xff]
        %v420 = vld [vmem:[#allocation4 + $0x2c0] sm:$0xff]
        %v421 = vld [vmem:[#allocation4 + $0x2c8] sm:$0xff]
        %v422 = vld [vmem:[#allocation4 + $0x2d0] sm:$0xff]
        %v423 = vld [vmem:[#allocation4 + $0x2d8] sm:$0xff]
        %v424 = vld [vmem:[#allocation4 + $0x2e0] sm:$0xff]
        %v425 = vld [vmem:[#allocation4 + $0x2e8] sm:$0xff]
        %v426 = vld [vmem:[#allocation4 + $0x2f0] sm:$0xff]
        %v427 = vld [vmem:[#allocation4 + $0x2f8] sm:$0xff]
        %428 = vmatprep.subr.mxu0 %v333
        %429 = vmatpush1.msra.mxu0 %v332
        %430 = vmatprep.subr.mxu0 %v335
        %431 = vmatpush1.msra.mxu0 %v334
        %432 = vmatprep.subr.mxu0 %v337
        %433 = vmatpush1.msra.mxu0 %v336
        %434 = vmatprep.subr.mxu0 %v339
        %435 = vmatpush1.msra.mxu0 %v338
        %436 = vmatprep.subr.mxu0 %v341
        %437 = vmatpush1.msra.mxu0 %v340
        %438 = vmatprep.subr.mxu0 %v343
        %439 = vmatpush1.msra.mxu0 %v342
        %440 = vmatprep.subr.mxu0 %v345
        %441 = vmatpush1.msra.mxu0 %v344
        %442 = vmatprep.subr.mxu0 %v347
        %443 = vmatpush1.msra.mxu0 %v346
        %444 = vmatprep.subr.mxu0 %v349
        %445 = vmatpush1.msra.mxu0 %v348
        %446 = vmatprep.subr.mxu0 %v351
        %447 = vmatpush1.msra.mxu0 %v350
        %448 = vmatprep.subr.mxu0 %v353
        %449 = vmatpush1.msra.mxu0 %v352
        %450 = vmatprep.subr.mxu0 %v355
        %451 = vmatpush1.msra.mxu0 %v354
        %452 = vmatprep.subr.mxu0 %v357
        %453 = vmatpush1.msra.mxu0 %v356
        %454 = vmatprep.subr.mxu0 %v359
        %455 = vmatpush1.msra.mxu0 %v358
        %456 = vmatprep.subr.mxu0 %v361
        %457 = vmatpush1.msra.mxu0 %v360
        %458 = vmatprep.subr.mxu0 %v363
        %459 = vmatpush1.msra.mxu0 %v362
        %460 = vmatprep.subr.mxu0 %v365
        %461 = vmatpush1.msra.mxu0 %v364
        %462 = vmatprep.subr.mxu0 %v367
        %463 = vmatpush1.msra.mxu0 %v366
        %464 = vmatprep.subr.mxu0 %v369
        %465 = vmatpush1.msra.mxu0 %v368
        %466 = vmatprep.subr.mxu0 %v371
        %467 = vmatpush1.msra.mxu0 %v370
        %468 = vmatprep.subr.mxu0 %v373
        %469 = vmatpush1.msra.mxu0 %v372
        %470 = vmatprep.subr.mxu0 %v375
        %471 = vmatpush1.msra.mxu0 %v374
        %472 = vmatprep.subr.mxu0 %v377
        %473 = vmatpush1.msra.mxu0 %v376
        %474 = vmatprep.subr.mxu0 %v379
        %475 = vmatpush1.msra.mxu0 %v378
        %476 = vmatprep.subr.mxu0 %v381
        %477 = vmatpush1.msra.mxu0 %v380
        %478 = vmatprep.subr.mxu0 %v383
        %479 = vmatpush1.msra.mxu0 %v382
        %480 = vmatprep.subr.mxu0 %v385
        %481 = vmatpush1.msra.mxu0 %v384
        %482 = vmatprep.subr.mxu0 %v387
        %483 = vmatpush1.msra.mxu0 %v386
        %484 = vmatprep.subr.mxu0 %v389
        %485 = vmatpush1.msra.mxu0 %v388
        %486 = vmatprep.subr.mxu0 %v391
        %487 = vmatpush1.msra.mxu0 %v390
        %488 = vmatprep.subr.mxu0 %v393
        %489 = vmatpush1.msra.mxu0 %v392
        %490 = vmatprep.subr.mxu0 %v395
        %491 = vmatpush1.msra.mxu0 %v394
        %492 = vmatprep.mubr.f32.mxu0 %v330
        %493 = vmatmul.mubr.f32.gmra.mrb[0].mxu0 %v328
        %v494 = vpop.f32.mrb[0].mxu0
        %v495 = vadd.f32 0.0, %v494
        %v496 = vpop.f32.mrb[0].mxu0
        %v497 = vadd.f32 0.0, %v496
        %498 = vmatprep.mubr.f32.mxu0 %v331
        %499 = vmatmul.mubr.f32.gmra.mrb[0].mxu0 %v329
        %v500 = vpop.f32.mrb[0].mxu0
        %v501 = vadd.f32 0.0, %v500
        %v502 = vpop.f32.mrb[0].mxu0
        %v503 = vadd.f32 0.0, %v502
        %504 = vdwg.mxu0
        %505 = vmatprep.subr.mxu0 %v397
        %506 = vmatpush1.msra.mxu0 %v396
        %507 = vmatprep.subr.mxu0 %v399
        %508 = vmatpush1.msra.mxu0 %v398
        %509 = vmatprep.subr.mxu0 %v401
        %510 = vmatpush1.msra.mxu0 %v400
        %511 = vmatprep.subr.mxu0 %v403
        %512 = vmatpush1.msra.mxu0 %v402
        %513 = vmatprep.subr.mxu0 %v405
        %514 = vmatpush1.msra.mxu0 %v404
        %515 = vmatprep.subr.mxu0 %v407
        %516 = vmatpush1.msra.mxu0 %v406
        %517 = vmatprep.subr.mxu0 %v409
        %518 = vmatpush1.msra.mxu0 %v408
        %519 = vmatprep.subr.mxu0 %v411
        %520 = vmatpush1.msra.mxu0 %v410
        %521 = vmatprep.subr.mxu0 %v413
        %522 = vmatpush1.msra.mxu0 %v412
        %523 = vmatprep.subr.mxu0 %v415
        %524 = vmatpush1.msra.mxu0 %v414
        %525 = vmatprep.subr.mxu0 %v417
        %526 = vmatpush1.msra.mxu0 %v416
        %527 = vmatprep.subr.mxu0 %v419
        %528 = vmatpush1.msra.mxu0 %v418
        %529 = vmatprep.subr.mxu0 %v421
        %530 = vmatpush1.msra.mxu0 %v420
        %531 = vmatprep.subr.mxu0 %v423
        %532 = vmatpush1.msra.mxu0 %v422
        %533 = vmatprep.subr.mxu0 %v425
        %534 = vmatpush1.msra.mxu0 %v424
        %535 = vmatprep.subr.mxu0 %v427
        %536 = vmatpush1.msra.mxu0 %v426
        %537 = vmatprep.subr.mxu0 0.0
        %538 = vmatpush1.msra.mxu0 0.0
        %539 = vmatprep.subr.mxu0 0.0
        %540 = vmatpush1.msra.mxu0 0.0
        %541 = vmatprep.subr.mxu0 0.0
        %542 = vmatpush1.msra.mxu0 0.0
        %543 = vmatprep.subr.mxu0 0.0
        %544 = vmatpush1.msra.mxu0 0.0
        %545 = vmatprep.subr.mxu0 0.0
        %546 = vmatpush1.msra.mxu0 0.0
        %547 = vmatprep.subr.mxu0 0.0
        %548 = vmatpush1.msra.mxu0 0.0
        %549 = vmatprep.subr.mxu0 0.0
        %550 = vmatpush1.msra.mxu0 0.0
        %551 = vmatprep.subr.mxu0 0.0
        %552 = vmatpush1.msra.mxu0 0.0
        %553 = vmatprep.subr.mxu0 0.0
        %554 = vmatpush1.msra.mxu0 0.0
        %555 = vmatprep.subr.mxu0 0.0
        %556 = vmatpush1.msra.mxu0 0.0
        %557 = vmatprep.subr.mxu0 0.0
        %558 = vmatpush1.msra.mxu0 0.0
        %559 = vmatprep.subr.mxu0 0.0
        %560 = vmatpush1.msra.mxu0 0.0
        %561 = vmatprep.subr.mxu0 0.0
        %562 = vmatpush1.msra.mxu0 0.0
        %563 = vmatprep.subr.mxu0 0.0
        %564 = vmatpush1.msra.mxu0 0.0
        %565 = vmatprep.subr.mxu0 0.0
        %566 = vmatpush1.msra.mxu0 0.0
        %567 = vmatprep.subr.mxu0 0.0
        %568 = vmatpush1.msra.mxu0 0.0
        %569 = vmatprep.mubr.f32.mxu0 0.0
        %570 = vmatmul.mubr.f32.gmra.mrb[0].mxu0 %v324
        %v571 = vpop.f32.mrb[0].mxu0
        %v572 = vadd.f32 %v495, %v571
        %v573 = vpop.f32.mrb[0].mxu0
        %v574 = vadd.f32 %v497, %v573
        %575 = vmatprep.mubr.f32.mxu0 0.0
        %576 = vmatmul.mubr.f32.gmra.mrb[0].mxu0 %v325
        %v577 = vpop.f32.mrb[0].mxu0
        %v578 = vadd.f32 %v501, %v577
        %v579 = vpop.f32.mrb[0].mxu0
        %v580 = vadd.f32 %v503, %v579
        %581 = vdwg.mxu0
        %v582 = vld [vmem:[%s2] sm:$0x1]
        %v584 = vlaneseq
        %v585 = vshrl.u32 %v584, 7
        %v586 = vsub.s32 0, %v585
        %v587 = vrot.slane %v582, %v586
        %v589 = vadd.f32 %v572, %v587
        %v590 = vadd.f32 %v578, %v587
        %v591 = vmul.f32 %v589, 0.01
        %v592 = vmul.f32 %v590, 0.01
        %v593 = vmax.f32 %v589, %v591
        %v594 = vmax.f32 %v590, %v592
        %595 = vst [vmem:[#allocation3 + $0x2] sm:$0xff] %v593
        %596 = vst [vmem:[#allocation3 + $0xa] sm:$0xff] %v594
        %v597 = vld [vmem:[#allocation3] sm:$0xff]
        %v598 = vld [vmem:[#allocation3 + $0x8] sm:$0xff]
        %v599 = vld [vmem:[#allocation3 + $0x1] sm:$0xff]
        %v600 = vld [vmem:[#allocation3 + $0x9] sm:$0xff]
        %v601 = vld [vmem:[#allocation7] sm:$0xff]
        %v602 = vld [vmem:[#allocation7 + $0x8] sm:$0xff]
        %v603 = vld [vmem:[#allocation7 + $0x10] sm:$0xff]
        %v604 = vld [vmem:[#allocation7 + $0x18] sm:$0xff]
        %v605 = vld [vmem:[#allocation7 + $0x20] sm:$0xff]
        %v606 = vld [vmem:[#allocation7 + $0x28] sm:$0xff]
        %v607 = vld [vmem:[#allocation7 + $0x30] sm:$0xff]
        %v608 = vld [vmem:[#allocation7 + $0x38] sm:$0xff]
        %v609 = vld [vmem:[#allocation7 + $0x40] sm:$0xff]
        %v610 = vld [vmem:[#allocation7 + $0x48] sm:$0xff]
        %v611 = vld [vmem:[#allocation7 + $0x50] sm:$0xff]
        %v612 = vld [vmem:[#allocation7 + $0x58] sm:$0xff]
        %v613 = vld [vmem:[#allocation7 + $0x60] sm:$0xff]
        %v614 = vld [vmem:[#allocation7 + $0x68] sm:$0xff]
        %v615 = vld [vmem:[#allocation7 + $0x70] sm:$0xff]
        %v616 = vld [vmem:[#allocation7 + $0x78] sm:$0xff]
        %v617 = vld [vmem:[#allocation7 + $0x80] sm:$0xff]
        %v618 = vld [vmem:[#allocation7 + $0x88] sm:$0xff]
        %v619 = vld [vmem:[#allocation7 + $0x90] sm:$0xff]
        %v620 = vld [vmem:[#allocation7 + $0x98] sm:$0xff]
        %v621 = vld [vmem:[#allocation7 + $0xa0] sm:$0xff]
        %v622 = vld [vmem:[#allocation7 + $0xa8] sm:$0xff]
        %v623 = vld [vmem:[#allocation7 + $0xb0] sm:$0xff]
        %v624 = vld [vmem:[#allocation7 + $0xb8] sm:$0xff]
        %v625 = vld [vmem:[#allocation7 + $0xc0] sm:$0xff]
        %v626 = vld [vmem:[#allocation7 + $0xc8] sm:$0xff]
        %v627 = vld [vmem:[#allocation7 + $0xd0] sm:$0xff]
        %v628 = vld [vmem:[#allocation7 + $0xd8] sm:$0xff]
        %v629 = vld [vmem:[#allocation7 + $0xe0] sm:$0xff]
        %v630 = vld [vmem:[#allocation7 + $0xe8] sm:$0xff]
        %v631 = vld [vmem:[#allocation7 + $0xf0] sm:$0xff]
        %v632 = vld [vmem:[#allocation7 + $0xf8] sm:$0xff]
        %v633 = vld [vmem:[#allocation7 + $0x100] sm:$0xff]
        %v634 = vld [vmem:[#allocation7 + $0x108] sm:$0xff]
        %v635 = vld [vmem:[#allocation7 + $0x110] sm:$0xff]
        %v636 = vld [vmem:[#allocation7 + $0x118] sm:$0xff]
        %v637 = vld [vmem:[#allocation7 + $0x120] sm:$0xff]
        %v638 = vld [vmem:[#allocation7 + $0x128] sm:$0xff]
        %v639 = vld [vmem:[#allocation7 + $0x130] sm:$0xff]
        %v640 = vld [vmem:[#allocation7 + $0x138] sm:$0xff]
        %v641 = vld [vmem:[#allocation7 + $0x140] sm:$0xff]
        %v642 = vld [vmem:[#allocation7 + $0x148] sm:$0xff]
        %v643 = vld [vmem:[#allocation7 + $0x150] sm:$0xff]
        %v644 = vld [vmem:[#allocation7 + $0x158] sm:$0xff]
        %v645 = vld [vmem:[#allocation7 + $0x160] sm:$0xff]
        %v646 = vld [vmem:[#allocation7 + $0x168] sm:$0xff]
        %v647 = vld [vmem:[#allocation7 + $0x170] sm:$0xff]
        %v648 = vld [vmem:[#allocation7 + $0x178] sm:$0xff]
        %v649 = vld [vmem:[%s4] sm:$0x1]
        %v651 = vlaneseq
        %v652 = vshrl.u32 %v651, 7
        %v653 = vsub.s32 0, %v652
        %v654 = vrot.slane %v649, %v653
        %656 = vmatprep.subr.mxu0 0.0
        %657 = vmatpush1.msra.mxu0 %v601
        %658 = vmatprep.subr.mxu0 0.0
        %659 = vmatpush1.msra.mxu0 %v602
        %660 = vmatprep.subr.mxu0 0.0
        %661 = vmatpush1.msra.mxu0 %v603
        %662 = vmatprep.subr.mxu0 0.0
        %663 = vmatpush1.msra.mxu0 %v604
        %664 = vmatprep.subr.mxu0 0.0
        %665 = vmatpush1.msra.mxu0 %v605
        %666 = vmatprep.subr.mxu0 0.0
        %667 = vmatpush1.msra.mxu0 %v606
        %668 = vmatprep.subr.mxu0 0.0
        %669 = vmatpush1.msra.mxu0 %v607
        %670 = vmatprep.subr.mxu0 0.0
        %671 = vmatpush1.msra.mxu0 %v608
        %672 = vmatprep.subr.mxu0 0.0
        %673 = vmatpush1.msra.mxu0 %v609
        %674 = vmatprep.subr.mxu0 0.0
        %675 = vmatpush1.msra.mxu0 %v610
        %676 = vmatprep.subr.mxu0 0.0
        %677 = vmatpush1.msra.mxu0 %v611
        %678 = vmatprep.subr.mxu0 0.0
        %679 = vmatpush1.msra.mxu0 %v612
        %680 = vmatprep.subr.mxu0 0.0
        %681 = vmatpush1.msra.mxu0 %v613
        %682 = vmatprep.subr.mxu0 0.0
        %683 = vmatpush1.msra.mxu0 %v614
        %684 = vmatprep.subr.mxu0 0.0
        %685 = vmatpush1.msra.mxu0 %v615
        %686 = vmatprep.subr.mxu0 0.0
        %687 = vmatpush1.msra.mxu0 %v616
        %688 = vmatprep.subr.mxu0 0.0
        %689 = vmatpush1.msra.mxu0 %v617
        %690 = vmatprep.subr.mxu0 0.0
        %691 = vmatpush1.msra.mxu0 %v618
        %692 = vmatprep.subr.mxu0 0.0
        %693 = vmatpush1.msra.mxu0 %v619
        %694 = vmatprep.subr.mxu0 0.0
        %695 = vmatpush1.msra.mxu0 %v620
        %696 = vmatprep.subr.mxu0 0.0
        %697 = vmatpush1.msra.mxu0 %v621
        %698 = vmatprep.subr.mxu0 0.0
        %699 = vmatpush1.msra.mxu0 %v622
        %700 = vmatprep.subr.mxu0 0.0
        %701 = vmatpush1.msra.mxu0 %v623
        %702 = vmatprep.subr.mxu0 0.0
        %703 = vmatpush1.msra.mxu0 %v624
        %704 = vmatprep.subr.mxu0 0.0
        %705 = vmatpush1.msra.mxu0 %v625
        %706 = vmatprep.subr.mxu0 0.0
        %707 = vmatpush1.msra.mxu0 %v626
        %708 = vmatprep.subr.mxu0 0.0
        %709 = vmatpush1.msra.mxu0 %v627
        %710 = vmatprep.subr.mxu0 0.0
        %711 = vmatpush1.msra.mxu0 %v628
        %712 = vmatprep.subr.mxu0 0.0
        %713 = vmatpush1.msra.mxu0 %v629
        %714 = vmatprep.subr.mxu0 0.0
        %715 = vmatpush1.msra.mxu0 %v630
        %716 = vmatprep.subr.mxu0 0.0
        %717 = vmatpush1.msra.mxu0 %v631
        %718 = vmatprep.subr.mxu0 0.0
        %719 = vmatpush1.msra.mxu0 %v632
        %720 = vmatprep.mubr.f32.mxu0 %v599
        %721 = vmatmul.mubr.f32.gmra.mrb[0].mxu0 %v597
        %v722 = vpop.f32.mrb[0].mxu0
        %v723 = vadd.f32 %v654, %v722
        %v724 = vpop.f32.mrb[0].mxu0
        %725 = vmatprep.mubr.f32.mxu0 %v600
        %726 = vmatmul.mubr.f32.gmra.mrb[0].mxu0 %v598
        %v727 = vpop.f32.mrb[0].mxu0
        %v728 = vadd.f32 %v654, %v727
        %v729 = vpop.f32.mrb[0].mxu0
        %730 = vdwg.mxu0
        %731 = vmatprep.subr.mxu0 0.0
        %732 = vmatpush1.msra.mxu0 %v633
        %733 = vmatprep.subr.mxu0 0.0
        %734 = vmatpush1.msra.mxu0 %v634
        %735 = vmatprep.subr.mxu0 0.0
        %736 = vmatpush1.msra.mxu0 %v635
        %737 = vmatprep.subr.mxu0 0.0
        %738 = vmatpush1.msra.mxu0 %v636
        %739 = vmatprep.subr.mxu0 0.0
        %740 = vmatpush1.msra.mxu0 %v637
        %741 = vmatprep.subr.mxu0 0.0
        %742 = vmatpush1.msra.mxu0 %v638
        %743 = vmatprep.subr.mxu0 0.0
        %744 = vmatpush1.msra.mxu0 %v639
        %745 = vmatprep.subr.mxu0 0.0
        %746 = vmatpush1.msra.mxu0 %v640
        %747 = vmatprep.subr.mxu0 0.0
        %748 = vmatpush1.msra.mxu0 %v641
        %749 = vmatprep.subr.mxu0 0.0
        %750 = vmatpush1.msra.mxu0 %v642
        %751 = vmatprep.subr.mxu0 0.0
        %752 = vmatpush1.msra.mxu0 %v643
        %753 = vmatprep.subr.mxu0 0.0
        %754 = vmatpush1.msra.mxu0 %v644
        %755 = vmatprep.subr.mxu0 0.0
        %756 = vmatpush1.msra.mxu0 %v645
        %757 = vmatprep.subr.mxu0 0.0
        %758 = vmatpush1.msra.mxu0 %v646
        %759 = vmatprep.subr.mxu0 0.0
        %760 = vmatpush1.msra.mxu0 %v647
        %761 = vmatprep.subr.mxu0 0.0
        %762 = vmatpush1.msra.mxu0 %v648
        %763 = vmatprep.subr.mxu0 0.0
        %764 = vmatpush1.msra.mxu0 0.0
        %765 = vmatprep.subr.mxu0 0.0
        %766 = vmatpush1.msra.mxu0 0.0
        %767 = vmatprep.subr.mxu0 0.0
        %768 = vmatpush1.msra.mxu0 0.0
        %769 = vmatprep.subr.mxu0 0.0
        %770 = vmatpush1.msra.mxu0 0.0
        %771 = vmatprep.subr.mxu0 0.0
        %772 = vmatpush1.msra.mxu0 0.0
        %773 = vmatprep.subr.mxu0 0.0
        %774 = vmatpush1.msra.mxu0 0.0
        %775 = vmatprep.subr.mxu0 0.0
        %776 = vmatpush1.msra.mxu0 0.0
        %777 = vmatprep.subr.mxu0 0.0
        %778 = vmatpush1.msra.mxu0 0.0
        %779 = vmatprep.subr.mxu0 0.0
        %780 = vmatpush1.msra.mxu0 0.0
        %781 = vmatprep.subr.mxu0 0.0
        %782 = vmatpush1.msra.mxu0 0.0
        %783 = vmatprep.subr.mxu0 0.0
        %784 = vmatpush1.msra.mxu0 0.0
        %785 = vmatprep.subr.mxu0 0.0
        %786 = vmatpush1.msra.mxu0 0.0
        %787 = vmatprep.subr.mxu0 0.0
        %788 = vmatpush1.msra.mxu0 0.0
        %789 = vmatprep.subr.mxu0 0.0
        %790 = vmatpush1.msra.mxu0 0.0
        %791 = vmatprep.subr.mxu0 0.0
        %792 = vmatpush1.msra.mxu0 0.0
        %793 = vmatprep.subr.mxu0 0.0
        %794 = vmatpush1.msra.mxu0 0.0
        %795 = vmatprep.mubr.f32.mxu0 0.0
        %796 = vmatmul.mubr.f32.gmra.mrb[0].mxu0 %v593
        %v797 = vpop.f32.mrb[0].mxu0
        %v798 = vadd.f32 %v723, %v797
        %v799 = vpop.f32.mrb[0].mxu0
        %800 = vmatprep.mubr.f32.mxu0 0.0
        %801 = vmatmul.mubr.f32.gmra.mrb[0].mxu0 %v594
        %v802 = vpop.f32.mrb[0].mxu0
        %v803 = vadd.f32 %v728, %v802
        %v804 = vpop.f32.mrb[0].mxu0
        %805 = vdwg.mxu0
        %v806 = vmul.f32 %v798, 0.01
        %v807 = vmul.f32 %v803, 0.01
        %v808 = vmax.f32 %v798, %v806
        %v809 = vmax.f32 %v803, %v807
        %v810 = vld [vmem:[%s5] sm:$0x1]
        %v812 = vlaneseq
        %v813 = vshrl.u32 %v812, 7
        %v814 = vsub.s32 0, %v813
        %v815 = vrot.slane %v810, %v814
        %v817 = vadd.f32 %v574, %v815
        %v818 = vadd.f32 %v580, %v815
        %v819 = vadd.f32 %v808, %v817
        %v820 = vadd.f32 %v809, %v818
        %s821 = sadd.s32 %s27, 1
        %p822 = scmp.lt.s32.totalorder %s821, 1
        // Predicated region
        $region57: #{tpu_custom_call.1} parent=43 // pred_check
          %p823 = pneg %p822
        $region58: #{tpu_custom_call.1} parent=43 // pred_check_branch
          %825 = sbr.rel (%p823) target = $region60
        $region59: #{tpu_custom_call.1} parent=43 // pred_region
          %826 = vst [vmem:[#allocation2 - $0x6] sm:$0xc0] %v325
          %827 = vst [vmem:[#allocation3 - $0x6] sm:$0xc0] %v594
        $region60: #{tpu_custom_call.1} parent=43 // pred_fallthru
          _
        %828 = vst [vmem:[%s299] sm:$0xff] %v819
        %829 = vst [vmem:[%s299 + $0x8] sm:$0xff] %v820
        %s830 = sand.u32 %s177, 1
        %s831 = scalar_lea.sflag [#allocation6], %s830
        %s832 = sand.u32 %s177, 1
        %s833 = smul.addr %s832, 16
        %s834 = scalar_lea.vmem [#allocation9], %s833
        // Predicated region
        $region61: #{tpu_custom_call.1} parent=43 // pred_check
          %p835 = pneg %p187
        $region62: #{tpu_custom_call.1} parent=43 // pred_check_branch
          %837 = sbr.rel (%p835) target = $region64
        $region63: #{tpu_custom_call.1} parent=43 // pred_region
          %s838 = smul.u32 2, %s27
          %s840 = ssub.s32 256, 256
          %841 = vsyncadd %s831, %s840
          %s842 = smul.addr %s26, 2
          %s843 = sadd.s32 %s838, %s842
          %s844 = smul.addr %s843, 128
          %s845 = scalar_lea.hbm %s6, %s844
          %s846 = sshll.u32 %s834, 4
          %s847 = int_to_ptr.vmem [resolvable:$true] %s846
          %852 = dma.vmem_to_hbm [thread:$0]  %s847, 256, %s845, %s831, 128, 128, 8
        $region64: #{tpu_custom_call.1} parent=43 // pred_fallthru
          _
      $region44: #{tpu_custom_call.1} parent=5 // pred_fallthru
        _
      %p853 = scmp.le.s32.totalorder 2, %s17
      // Predicated region
      $region65: #{tpu_custom_call.1} parent=5 // pred_check
        %p854 = pneg %p853
      $region66: #{tpu_custom_call.1} parent=5 // pred_check_branch
        %856 = sbr.rel (%p854) target = $region68
      $region67: #{tpu_custom_call.1} parent=5 // pred_region
        %s857 = ssub.s32 %s17, 2
        // Predicated region
        $region69: #{tpu_custom_call.1} parent=67 // pred_check
          %p858 = pneg %p193
        $region70: #{tpu_custom_call.1} parent=67 // pred_check_branch
          %860 = sbr.rel (%p858) target = $region72
        $region71: #{tpu_custom_call.1} parent=67 // pred_region
          %s861 = sand.u32 %s178, 1
          %s862 = scalar_lea.sflag [#allocation6], %s861
          %s863 = sand.u32 %s178, 1
          %s864 = smul.addr %s863, 16
          %s865 = scalar_lea.vmem [#allocation9], %s864
          %866 = dma.done %s862, 256
        $region72: #{tpu_custom_call.1} parent=67 // pred_fallthru
          _
      $region68: #{tpu_custom_call.1} parent=5 // pred_fallthru
        _
    $region6: #{tpu_custom_call.1} parent=1 // loop_footer
      %s21 = sadd.s32 1, %s17
    $region7: #{tpu_custom_call.1} parent=1 // loop_footer_branch
      %16 = sbr.rel target = $region3
    $region8: #{tpu_custom_call.1} parent=1 // loop_exit
      _
    %867 = vsyncpa [#allocation5], 1
    %s868 = scalar_lea.sflag [#allocation5], 1
    %869 = vsyncpa %s868, 1
    %870 = vsyncpa [#allocation8], 1
    %871 = vsyncpa [#allocation6], 1
    %s872 = scalar_lea.sflag [#allocation6], 1
    %873 = vsyncpa %s872, 1

</llo_original>
